<compile_context>
chip_gen: v5e
topology: v5e:2x2
jax: 0.10.0
libtpu: 0.0.40
codegen_flags: <defaults>
</compile_context>

<pallas_src>
import jax
import jax.numpy as jnp
from jax import lax
from jax.experimental import pallas as pl
from jax.experimental.pallas import tpu as pltpu


def _round_up(x: int, m: int) -> int:
    return ((x + m - 1) // m) * m


def _tpu_vmem_capacity_bytes() -> int:
    try:
        return int(pltpu.get_tpu_info().vmem_capacity_bytes)
    except Exception:
        return 128 * 1024 * 1024  # v5e / v6e default


def mlp_kernel(drug_ref, se_ref,
               wd_ref, bd_ref,
               ws_ref, bs_ref,
               w1d_ref, w1s_ref, b1_ref,
               w2_ref, b2_ref,
               out_ref):
    # drug_reduction / se_reduction: (TB, D) @ (D, 64) + (1, 64), f32 accumulation.
    drug_red = jnp.dot(drug_ref[...], wd_ref[...],
                       preferred_element_type=jnp.float32) + bd_ref[...]
    se_red = jnp.dot(se_ref[...], ws_ref[...],
                     preferred_element_type=jnp.float32) + bs_ref[...]

    # classifier layer 1 on concat([drug_red, se_red], axis=1) -> (TB, 32)
    #   concat(d, s) @ W1 == d @ W1[:64] + s @ W1[64:]
    # Keep the MXU on the activation dtype (bf16 path casts the small
    # intermediates; f32 path casts are no-ops).  Accumulation stays f32.
    mm_dtype = w1d_ref.dtype
    h = (jnp.dot(drug_red.astype(mm_dtype), w1d_ref[...],
                 preferred_element_type=jnp.float32)
         + jnp.dot(se_red.astype(mm_dtype), w1s_ref[...],
                   preferred_element_type=jnp.float32)
         + b1_ref[...])
    h = jnp.maximum(h, 0.0)  # ReLU

    # classifier layer 2, contracted so the result lands as a lane-dense (1, TB)
    # row: out[0, t] = sum_c w2_row[0, c] * h[t, c] == (h @ w2)[t, 0]
    out_row = lax.dot_general(w2_ref[...], h, (((1,), (1,)), ((), ())),
                              preferred_element_type=jnp.float32) + b2_ref[...]
    # out_ref block is (1, 1, TB): unmasked, lane-dense store.
    out_ref[...] = out_row[None].astype(out_ref.dtype)


def mlp_forward(drug, se, params, *, batch_tile=None):
    """drug, se: (B, input_dim), f32 or bf16 (same dtype).  Returns (B, 1) f32.

    Activations are consumed in whatever dtype the producer emits — no
    wrapper-side full-array cast or pad passes over HBM.
    """
    B, D = drug.shape
    assert se.shape == (B, D)
    assert drug.dtype == se.dtype

    wd, bd, ws, bs, w1, b1, w2, b2 = params
    # Split classifier-layer-1 weight into the halves acting on drug / se parts.
    w1d, w1s = w1[:64, :], w1[64:, :]
    # Final layer weight as a (1, 32) row (same values as w2.T).
    w2_row = w2.reshape(1, -1)

    act_dtype = jnp.dtype(drug.dtype)
    if act_dtype == jnp.bfloat16:
        # Only the small resident weights are cast (a few hundred KiB, one-time);
        # activations stay as produced upstream.
        wd = wd.astype(jnp.bfloat16)
        ws = ws.astype(jnp.bfloat16)
        w1d = w1d.astype(jnp.bfloat16)
        w1s = w1s.astype(jnp.bfloat16)

    dtype_bytes = act_dtype.itemsize
    sub = 8 if dtype_bytes >= 4 else 16  # sublane packing (f32 vs bf16)

    # --- generation-aware tile / step selection -------------------------------
    vmem_cap = _tpu_vmem_capacity_bytes()
    is_v7x = vmem_cap <= 64 * 1024 * 1024
    if is_v7x:
        vmem_limit = 48 * 1024 * 1024
        target_steps = 8          # 2 TensorCores x >=4 pipelined steps each
        input_budget = vmem_limit // 2
    else:
        vmem_limit = 64 * 1024 * 1024
        target_steps = 4          # single TC, just enough steps to pipeline
        input_budget = 3 * vmem_limit // 4
    # Per-step activation footprint = 2 inputs x 2 pipeline buffers x tile x D x bytes.
    max_tile = max(sub, (input_budget // (4 * D * dtype_bytes)) // sub * sub)

    # Padding/step-aware tile: aim for ~target_steps grid steps, never exceed the
    # VMEM cap, and honor an explicit user override as an upper bound.
    tile = _round_up(pl.cdiv(B, target_steps), sub)
    tile = min(tile, max_tile)
    if batch_tile is not None:
        tile = min(tile, _round_up(max(1, batch_tile), sub))
    tile = max(tile, sub)

    grid = (pl.cdiv(B, tile),)

    batch_map = lambda i: (i, 0)
    full_map = lambda i: (0, 0)   # constant block index -> stays resident in VMEM

    out3 = pl.pallas_call(
        mlp_kernel,
        out_shape=jax.ShapeDtypeStruct((grid[0], 1, tile), jnp.float32),
        grid_spec=pltpu.PrefetchScalarGridSpec(
            num_scalar_prefetch=0,
            grid=grid,
            in_specs=[
                pl.BlockSpec((tile, D), batch_map),   # drug features (ragged last block)
                pl.BlockSpec((tile, D), batch_map),   # se features   (ragged last block)
                pl.BlockSpec((D, 64), full_map),      # W drug_reduction
                pl.BlockSpec((1, 64), full_map),      # b drug_reduction
                pl.BlockSpec((D, 64), full_map),      # W se_reduction
                pl.BlockSpec((1, 64), full_map),      # b se_reduction
                pl.BlockSpec((64, 32), full_map),     # W1 (drug half)
                pl.BlockSpec((64, 32), full_map),     # W1 (se half)
                pl.BlockSpec((1, 32), full_map),      # b1
                pl.BlockSpec((1, 32), full_map),      # W2 as a row
                pl.BlockSpec((1, 1), full_map),       # b2
            ],
            out_specs=pl.BlockSpec((1, 1, tile), lambda i: (i, 0, 0)),
        ),
        compiler_params=pltpu.CompilerParams(
            dimension_semantics=("parallel",),
            vmem_limit_bytes=vmem_limit,
        ),
    )(drug, se, wd, bd, ws, bs, w1d, w1s, b1, w2_row, b2)

    # (G, 1, tile) -> (G*tile, 1), drop the ragged tail rows.
    return out3.reshape(grid[0] * tile, 1)[:B]


def init_params(key, input_dim=768):
    ks = jax.random.split(key, 8)
    scale = 0.02
    wd = scale * jax.random.normal(ks[0], (input_dim, 64), jnp.float32)
    bd = scale * jax.random.normal(ks[1], (1, 64), jnp.float32)
    ws = scale * jax.random.normal(ks[2], (input_dim, 64), jnp.float32)
    bs = scale * jax.random.normal(ks[3], (1, 64), jnp.float32)
    w1 = scale * jax.random.normal(ks[4], (128, 32), jnp.float32)
    b1 = scale * jax.random.normal(ks[5], (1, 32), jnp.float32)
    w2 = scale * jax.random.normal(ks[6], (32, 1), jnp.float32)
    b2 = scale * jax.random.normal(ks[7], (1, 1), jnp.float32)
    return (wd, bd, ws, bs, w1, b1, w2, b2)


def mlp_reference(drug, se, params):
    """Pure-JAX reference matching the PyTorch forward exactly."""
    wd, bd, ws, bs, w1, b1, w2, b2 = params
    drug_red = drug @ wd + bd
    se_red = se @ ws + bs
    combined = jnp.concatenate([drug_red, se_red], axis=1)
    h = jnp.maximum(combined @ w1 + b1, 0.0)
    return h @ w2 + b2


if __name__ == "__main__":
    key = jax.random.PRNGKey(0)
    k_p, k_d, k_s = jax.random.split(key, 3)

    input_dim = 768
    batch = 8

    params = init_params(k_p, input_dim)
    drug = jax.random.normal(k_d, (batch, input_dim), jnp.float32)
    se = jax.random.normal(k_s, (batch, input_dim), jnp.float32)
    ref = mlp_reference(drug, se, params)

    # f32 path (tile auto-shrinks for the 8-row batch).
    out = jax.block_until_ready(mlp_forward(drug, se, params))
    assert out.shape == (batch, 1)
    assert jnp.allclose(out, ref, atol=1e-4, rtol=1e-4), "f32 mismatch vs reference"

    # bf16 path: the "upstream producer" emits bf16 directly (no wrapper cast pass).
    drug_bf16 = drug.astype(jnp.bfloat16)
    se_bf16 = se.astype(jnp.bfloat16)
    ref_bf16 = mlp_reference(drug_bf16.astype(jnp.float32),
                             se_bf16.astype(jnp.float32), params)
    out_bf16 = jax.block_until_ready(mlp_forward(drug_bf16, se_bf16, params))
    assert out_bf16.shape == (batch, 1)
    assert jnp.allclose(out_bf16, ref_bf16, atol=5e-3, rtol=5e-2), "bf16 mismatch vs reference"

    # Ragged multi-step grid path: B=40 with a 16-row tile -> 3 grid steps, last
    # block ragged (no whole-array pad; tail rows are discarded).
    batch2 = 40
    drug2 = jax.random.normal(jax.random.PRNGKey(1), (batch2, input_dim), jnp.float32)
    se2 = jax.random.normal(jax.random.PRNGKey(2), (batch2, input_dim), jnp.float32)
    out2 = jax.block_until_ready(mlp_forward(drug2, se2, params, batch_tile=16))
    ref2 = mlp_reference(drug2, se2, params)
    assert out2.shape == (batch2, 1)
    assert jnp.allclose(out2, ref2, atol=1e-4, rtol=1e-4), "ragged-batch mismatch"

    print("KERNEL_OK")
</pallas_src>

<mosaic_0001>
module attributes {stable_mosaic.version = 11 : i64} {
  func.func @mlp_kernel(%arg0: i32, %arg1: memref<8x768xf32, #tpu.memory_space<vmem>>, %arg2: memref<8x768xf32, #tpu.memory_space<vmem>>, %arg3: memref<768x64xf32, #tpu.memory_space<vmem>>, %arg4: memref<1x64xf32, #tpu.memory_space<vmem>>, %arg5: memref<768x64xf32, #tpu.memory_space<vmem>>, %arg6: memref<1x64xf32, #tpu.memory_space<vmem>>, %arg7: memref<64x32xf32, #tpu.memory_space<vmem>>, %arg8: memref<64x32xf32, #tpu.memory_space<vmem>>, %arg9: memref<1x32xf32, #tpu.memory_space<vmem>>, %arg10: memref<1x32xf32, #tpu.memory_space<vmem>>, %arg11: memref<1x1xf32, #tpu.memory_space<vmem>>, %arg12: memref<1x1x8xf32, #tpu.memory_space<vmem>>) attributes {dimension_semantics = [#tpu.dimension_semantics<parallel>], iteration_bounds = array<i64: 1>, scalar_prefetch = 0 : i64, scratch_operands = 0 : i64, tpu.core_type = #tpu.core_type<tc>, window_params = [{transform_indices = @transform_0, window_bounds = array<i64: 8, 768>}, {transform_indices = @transform_1, window_bounds = array<i64: 8, 768>}, {pipeline_mode = #tpu.pipeline_mode<synchronous>, transform_indices = @transform_2, window_bounds = array<i64: 768, 64>}, {pipeline_mode = #tpu.pipeline_mode<synchronous>, transform_indices = @transform_3, window_bounds = array<i64: 1, 64>}, {pipeline_mode = #tpu.pipeline_mode<synchronous>, transform_indices = @transform_4, window_bounds = array<i64: 768, 64>}, {pipeline_mode = #tpu.pipeline_mode<synchronous>, transform_indices = @transform_5, window_bounds = array<i64: 1, 64>}, {pipeline_mode = #tpu.pipeline_mode<synchronous>, transform_indices = @transform_6, window_bounds = array<i64: 64, 32>}, {pipeline_mode = #tpu.pipeline_mode<synchronous>, transform_indices = @transform_7, window_bounds = array<i64: 64, 32>}, {pipeline_mode = #tpu.pipeline_mode<synchronous>, transform_indices = @transform_8, window_bounds = array<i64: 1, 32>}, {pipeline_mode = #tpu.pipeline_mode<synchronous>, transform_indices = @transform_9, window_bounds = array<i64: 1, 32>}, {pipeline_mode = #tpu.pipeline_mode<synchronous>, transform_indices = @transform_10, window_bounds = array<i64: 1, 1>}, {transform_indices = @transform_11, window_bounds = array<i64: 1, 1, 8>}]} {
    %c0 = arith.constant 0 : index
    %c0_0 = arith.constant 0 : index
    %0 = vector.load %arg1[%c0, %c0_0] : memref<8x768xf32, #tpu.memory_space<vmem>>, vector<8x768xf32>
    %c0_1 = arith.constant 0 : index
    %c0_2 = arith.constant 0 : index
    %1 = vector.load %arg3[%c0_1, %c0_2] : memref<768x64xf32, #tpu.memory_space<vmem>>, vector<768x64xf32>
    %cst = arith.constant dense<0.000000e+00> : vector<8x64xf32>
    %2 = tpu.matmul %0, %1, %cst {dimension_numbers = #tpu.dot_dimension_numbers<[1], [0], [0], [1], [0, 0, 1, 1], [], []>} : vector<8x768xf32>, vector<768x64xf32>, vector<8x64xf32> -> vector<8x64xf32>
    %c0_3 = arith.constant 0 : index
    %c0_4 = arith.constant 0 : index
    %3 = vector.load %arg4[%c0_3, %c0_4] : memref<1x64xf32, #tpu.memory_space<vmem>>, vector<1x64xf32>
    %4 = vector.broadcast %3 : vector<1x64xf32> to vector<8x64xf32>
    %5 = arith.addf %2, %4 : vector<8x64xf32>
    %c0_5 = arith.constant 0 : index
    %c0_6 = arith.constant 0 : index
    %6 = vector.load %arg2[%c0_5, %c0_6] : memref<8x768xf32, #tpu.memory_space<vmem>>, vector<8x768xf32>
    %c0_7 = arith.constant 0 : index
    %c0_8 = arith.constant 0 : index
    %7 = vector.load %arg5[%c0_7, %c0_8] : memref<768x64xf32, #tpu.memory_space<vmem>>, vector<768x64xf32>
    %cst_9 = arith.constant dense<0.000000e+00> : vector<8x64xf32>
    %8 = tpu.matmul %6, %7, %cst_9 {dimension_numbers = #tpu.dot_dimension_numbers<[1], [0], [0], [1], [0, 0, 1, 1], [], []>} : vector<8x768xf32>, vector<768x64xf32>, vector<8x64xf32> -> vector<8x64xf32>
    %c0_10 = arith.constant 0 : index
    %c0_11 = arith.constant 0 : index
    %9 = vector.load %arg6[%c0_10, %c0_11] : memref<1x64xf32, #tpu.memory_space<vmem>>, vector<1x64xf32>
    %10 = vector.broadcast %9 : vector<1x64xf32> to vector<8x64xf32>
    %11 = arith.addf %8, %10 : vector<8x64xf32>
    %c0_12 = arith.constant 0 : index
    %c0_13 = arith.constant 0 : index
    %12 = vector.load %arg7[%c0_12, %c0_13] : memref<64x32xf32, #tpu.memory_space<vmem>>, vector<64x32xf32>
    %cst_14 = arith.constant dense<0.000000e+00> : vector<8x32xf32>
    %13 = tpu.matmul %5, %12, %cst_14 {dimension_numbers = #tpu.dot_dimension_numbers<[1], [0], [0], [1], [0, 0, 1, 1], [], []>} : vector<8x64xf32>, vector<64x32xf32>, vector<8x32xf32> -> vector<8x32xf32>
    %c0_15 = arith.constant 0 : index
    %c0_16 = arith.constant 0 : index
    %14 = vector.load %arg8[%c0_15, %c0_16] : memref<64x32xf32, #tpu.memory_space<vmem>>, vector<64x32xf32>
    %cst_17 = arith.constant dense<0.000000e+00> : vector<8x32xf32>
    %15 = tpu.matmul %11, %14, %cst_17 {dimension_numbers = #tpu.dot_dimension_numbers<[1], [0], [0], [1], [0, 0, 1, 1], [], []>} : vector<8x64xf32>, vector<64x32xf32>, vector<8x32xf32> -> vector<8x32xf32>
    %16 = arith.addf %13, %15 : vector<8x32xf32>
    %c0_18 = arith.constant 0 : index
    %c0_19 = arith.constant 0 : index
    %17 = vector.load %arg9[%c0_18, %c0_19] : memref<1x32xf32, #tpu.memory_space<vmem>>, vector<1x32xf32>
    %18 = vector.broadcast %17 : vector<1x32xf32> to vector<8x32xf32>
    %19 = arith.addf %16, %18 : vector<8x32xf32>
    %cst_20 = arith.constant 0.000000e+00 : f32
    %20 = vector.broadcast %cst_20 : f32 to vector<8x32xf32>
    %21 = arith.maximumf %19, %20 : vector<8x32xf32>
    %c0_21 = arith.constant 0 : index
    %c0_22 = arith.constant 0 : index
    %22 = vector.load %arg10[%c0_21, %c0_22] : memref<1x32xf32, #tpu.memory_space<vmem>>, vector<1x32xf32>
    %cst_23 = arith.constant dense<0.000000e+00> : vector<1x8xf32>
    %23 = tpu.matmul %22, %21, %cst_23 {dimension_numbers = #tpu.dot_dimension_numbers<[1], [1], [0], [0], [0, 0, 1, 0], [], []>} : vector<1x32xf32>, vector<8x32xf32>, vector<1x8xf32> -> vector<1x8xf32>
    %c0_24 = arith.constant 0 : index
    %c0_25 = arith.constant 0 : index
    %24 = vector.load %arg11[%c0_24, %c0_25] : memref<1x1xf32, #tpu.memory_space<vmem>>, vector<1x1xf32>
    %25 = vector.broadcast %24 : vector<1x1xf32> to vector<1x8xf32>
    %26 = arith.addf %23, %25 : vector<1x8xf32>
    %27 = vector.shape_cast %26 : vector<1x8xf32> to vector<1x1x8xf32>
    %c0_26 = arith.constant 0 : index
    %c0_27 = arith.constant 0 : index
    %c0_28 = arith.constant 0 : index
    %28 = vector.load %arg12[%c0_26, %c0_27, %c0_28] : memref<1x1x8xf32, #tpu.memory_space<vmem>>, vector<1x1x8xf32>
    tpu.vector_store %arg12[%c0_26, %c0_27, %c0_28], %27 {strides = array<i32>} : memref<1x1x8xf32, #tpu.memory_space<vmem>>, vector<1x1x8xf32>,
    return
  }
  func.func @transform_0(%arg0: i32) -> (i32, i32) {
    %c0_i32 = arith.constant 0 : i32
    %c0_i32_0 = arith.constant 0 : i32
    return %arg0, %c0_i32 : i32, i32
  }
  func.func @transform_1(%arg0: i32) -> (i32, i32) {
    %c0_i32 = arith.constant 0 : i32
    %c0_i32_0 = arith.constant 0 : i32
    return %arg0, %c0_i32 : i32, i32
  }
  func.func @transform_2(%arg0: i32) -> (i32, i32) {
    %c0_i32 = arith.constant 0 : i32
    %c0_i32_0 = arith.constant 0 : i32
    %c0_i32_1 = arith.constant 0 : i32
    return %c0_i32, %c0_i32_0 : i32, i32
  }
  func.func @transform_3(%arg0: i32) -> (i32, i32) {
    %c0_i32 = arith.constant 0 : i32
    %c0_i32_0 = arith.constant 0 : i32
    %c0_i32_1 = arith.constant 0 : i32
    return %c0_i32, %c0_i32_0 : i32, i32
  }
  func.func @transform_4(%arg0: i32) -> (i32, i32) {
    %c0_i32 = arith.constant 0 : i32
    %c0_i32_0 = arith.constant 0 : i32
    %c0_i32_1 = arith.constant 0 : i32
    return %c0_i32, %c0_i32_0 : i32, i32
  }
  func.func @transform_5(%arg0: i32) -> (i32, i32) {
    %c0_i32 = arith.constant 0 : i32
    %c0_i32_0 = arith.constant 0 : i32
    %c0_i32_1 = arith.constant 0 : i32
    return %c0_i32, %c0_i32_0 : i32, i32
  }
  func.func @transform_6(%arg0: i32) -> (i32, i32) {
    %c0_i32 = arith.constant 0 : i32
    %c0_i32_0 = arith.constant 0 : i32
    %c0_i32_1 = arith.constant 0 : i32
    return %c0_i32, %c0_i32_0 : i32, i32
  }
  func.func @transform_7(%arg0: i32) -> (i32, i32) {
    %c0_i32 = arith.constant 0 : i32
    %c0_i32_0 = arith.constant 0 : i32
    %c0_i32_1 = arith.constant 0 : i32
    return %c0_i32, %c0_i32_0 : i32, i32
  }
  func.func @transform_8(%arg0: i32) -> (i32, i32) {
    %c0_i32 = arith.constant 0 : i32
    %c0_i32_0 = arith.constant 0 : i32
    %c0_i32_1 = arith.constant 0 : i32
    return %c0_i32, %c0_i32_0 : i32, i32
  }
  func.func @transform_9(%arg0: i32) -> (i32, i32) {
    %c0_i32 = arith.constant 0 : i32
    %c0_i32_0 = arith.constant 0 : i32
    %c0_i32_1 = arith.constant 0 : i32
    return %c0_i32, %c0_i32_0 : i32, i32
  }
  func.func @transform_10(%arg0: i32) -> (i32, i32) {
    %c0_i32 = arith.constant 0 : i32
    %c0_i32_0 = arith.constant 0 : i32
    %c0_i32_1 = arith.constant 0 : i32
    return %c0_i32, %c0_i32_0 : i32, i32
  }
  func.func @transform_11(%arg0: i32) -> (i32, i32, i32) {
    %c0_i32 = arith.constant 0 : i32
    %c0_i32_0 = arith.constant 0 : i32
    %c0_i32_1 = arith.constant 0 : i32
    return %arg0, %c0_i32, %c0_i32_0 : i32, i32, i32
  }
}

</mosaic_0001>

<llo_original>
// kernel: tpu_custom_call.1
$region0: #{tpu_custom_call.1}
  #allocation0 [shape = 'u32[]', space=smem, size = 0x4, offset = 0x4, fixed_abs, tag = 'smem constant byte address 0x4 - core index']
  #allocation1 [shape = 'u32[72,128]{1,0:T(1,128)}', space=vmem, size = 0x9000, scoped, tag = 'internal scratch']
  #allocation2 [shape = 'f32[1,1]{1,0:T(1,128)S(1)}', space=vmem, size = 0x200, scoped, tag = 'scoped memory for tpu_custom_call.1']
  %s0 = inlined_call_operand.vmem [shape: f32[8,768], index: 0, kind: input, shape index: {}]
  %s1 = inlined_call_operand.vmem [shape: f32[8,768], index: 1, kind: input, shape index: {}]
  %s2 = inlined_call_operand.vmem [shape: f32[768,64], index: 2, kind: input, shape index: {}]
  %s3 = inlined_call_operand.vmem [shape: f32[1,64], index: 3, kind: input, shape index: {}]
  %s4 = inlined_call_operand.vmem [shape: f32[768,64], index: 4, kind: input, shape index: {}]
  %s5 = inlined_call_operand.vmem [shape: f32[1,64], index: 5, kind: input, shape index: {}]
  %s6 = inlined_call_operand.vmem [shape: f32[64,32], index: 6, kind: input, shape index: {}]
  %s7 = inlined_call_operand.vmem [shape: f32[64,32], index: 7, kind: input, shape index: {}]
  %s8 = inlined_call_operand.vmem [shape: f32[1,32], index: 8, kind: input, shape index: {}]
  %s9 = inlined_call_operand.vmem [shape: f32[1,32], index: 9, kind: input, shape index: {}]
  %s10 = inlined_call_operand.<no memory space> [shape: f32[1,1], index: 10, kind: input, shape index: {}]
  %s11 = inlined_call_operand.hbm [shape: f32[1,1,8], index: 11, kind: output, shape index: {}]
  %s12 = sld [smem:[#allocation0]]
  $region54: #{tpu_custom_call.1} parent=0
    _
  %s14 = ssub.s32 1, %s12
  %s15 = scalar_select 0, %s14, %s12
  %v16 = vstv %s10
  %17 = vst [vmem:[#allocation2] sm:$0x1] %v16
  $region1: #{tpu_custom_call.1} parent=0
    #allocation3 [shape = 'u8[512]{0}', space=vmem, size = 0x400, scoped, tag = 'output window, operand 0, single buffered']
    #allocation4 [shape = 's32[1]{0}', space=sflag, size = 0x4, scoped, tag = 'scoped memory for tpu_custom_call.1']
    %18 = vsyncpa [#allocation4], 0
    // Predicated region
    $region2: #{tpu_custom_call.1} parent=1 // pred_check
      _
    $region3: #{tpu_custom_call.1} parent=1 // pred_check_branch
      %20 = sbr.rel (0) target = $region5
    $region4: #{tpu_custom_call.1} parent=1 // pred_region
      _
    $region5: #{tpu_custom_call.1} parent=1 // pred_fallthru
      _
    // Predicated region
    $region6: #{tpu_custom_call.1} parent=1 // pred_check
      _
    $region7: #{tpu_custom_call.1} parent=1 // pred_check_branch
      %22 = sbr.rel (0) target = $region9
    $region8: #{tpu_custom_call.1} parent=1 // pred_region
      _
    $region9: #{tpu_custom_call.1} parent=1 // pred_fallthru
      _
    // Predicated region
    $region10: #{tpu_custom_call.1} parent=1 // pred_check
      _
    $region11: #{tpu_custom_call.1} parent=1 // pred_check_branch
      %24 = sbr.rel (0) target = $region13
    $region12: #{tpu_custom_call.1} parent=1 // pred_region
      _
    $region13: #{tpu_custom_call.1} parent=1 // pred_fallthru
      _
    // Predicated region
    $region14: #{tpu_custom_call.1} parent=1 // pred_check
      _
    $region15: #{tpu_custom_call.1} parent=1 // pred_check_branch
      %26 = sbr.rel (0) target = $region17
    $region16: #{tpu_custom_call.1} parent=1 // pred_region
      _
    $region17: #{tpu_custom_call.1} parent=1 // pred_fallthru
      _
    // Predicated region
    $region18: #{tpu_custom_call.1} parent=1 // pred_check
      _
    $region19: #{tpu_custom_call.1} parent=1 // pred_check_branch
      %28 = sbr.rel (0) target = $region21
    $region20: #{tpu_custom_call.1} parent=1 // pred_region
      _
    $region21: #{tpu_custom_call.1} parent=1 // pred_fallthru
      _
    // Predicated region
    $region22: #{tpu_custom_call.1} parent=1 // pred_check
      _
    $region23: #{tpu_custom_call.1} parent=1 // pred_check_branch
      %30 = sbr.rel (0) target = $region25
    $region24: #{tpu_custom_call.1} parent=1 // pred_region
      _
    $region25: #{tpu_custom_call.1} parent=1 // pred_fallthru
      _
    // Predicated region
    $region26: #{tpu_custom_call.1} parent=1 // pred_check
      _
    $region27: #{tpu_custom_call.1} parent=1 // pred_check_branch
      %32 = sbr.rel (0) target = $region29
    $region28: #{tpu_custom_call.1} parent=1 // pred_region
      _
    $region29: #{tpu_custom_call.1} parent=1 // pred_fallthru
      _
    // Predicated region
    $region30: #{tpu_custom_call.1} parent=1 // pred_check
      _
    $region31: #{tpu_custom_call.1} parent=1 // pred_check_branch
      %34 = sbr.rel (0) target = $region33
    $region32: #{tpu_custom_call.1} parent=1 // pred_region
      _
    $region33: #{tpu_custom_call.1} parent=1 // pred_fallthru
      _
    // Predicated region
    $region34: #{tpu_custom_call.1} parent=1 // pred_check
      _
    $region35: #{tpu_custom_call.1} parent=1 // pred_check_branch
      %36 = sbr.rel (0) target = $region37
    $region36: #{tpu_custom_call.1} parent=1 // pred_region
      _
    $region37: #{tpu_custom_call.1} parent=1 // pred_fallthru
      _
    // Predicated region
    $region38: #{tpu_custom_call.1} parent=1 // pred_check
      _
    $region39: #{tpu_custom_call.1} parent=1 // pred_check_branch
      %38 = sbr.rel (0) target = $region41
    $region40: #{tpu_custom_call.1} parent=1 // pred_region
      _
    $region41: #{tpu_custom_call.1} parent=1 // pred_fallthru
      _
    // Predicated region
    $region42: #{tpu_custom_call.1} parent=1 // pred_check
      _
    $region43: #{tpu_custom_call.1} parent=1 // pred_check_branch
      %40 = sbr.rel (0) target = $region45
    $region44: #{tpu_custom_call.1} parent=1 // pred_region
      _
    $region45: #{tpu_custom_call.1} parent=1 // pred_fallthru
      _
    %v41 = vld [vmem:[%s0] sm:$0xff]
    %v42 = vld [vmem:[%s0 + $0x8] sm:$0xff]
    %v43 = vld [vmem:[%s0 + $0x10] sm:$0xff]
    %v44 = vld [vmem:[%s0 + $0x18] sm:$0xff]
    %v45 = vld [vmem:[%s0 + $0x20] sm:$0xff]
    %v46 = vld [vmem:[%s0 + $0x28] sm:$0xff]
    %v47 = vld [vmem:[%s2] sm:$0xff]
    %v48 = vld [vmem:[%s2 + $0x8] sm:$0xff]
    %v49 = vld [vmem:[%s2 + $0x10] sm:$0xff]
    %v50 = vld [vmem:[%s2 + $0x18] sm:$0xff]
    %v51 = vld [vmem:[%s2 + $0x20] sm:$0xff]
    %v52 = vld [vmem:[%s2 + $0x28] sm:$0xff]
    %v53 = vld [vmem:[%s2 + $0x30] sm:$0xff]
    %v54 = vld [vmem:[%s2 + $0x38] sm:$0xff]
    %v55 = vld [vmem:[%s2 + $0x40] sm:$0xff]
    %v56 = vld [vmem:[%s2 + $0x48] sm:$0xff]
    %v57 = vld [vmem:[%s2 + $0x50] sm:$0xff]
    %v58 = vld [vmem:[%s2 + $0x58] sm:$0xff]
    %v59 = vld [vmem:[%s2 + $0x60] sm:$0xff]
    %v60 = vld [vmem:[%s2 + $0x68] sm:$0xff]
    %v61 = vld [vmem:[%s2 + $0x70] sm:$0xff]
    %v62 = vld [vmem:[%s2 + $0x78] sm:$0xff]
    %v63 = vld [vmem:[%s2 + $0x80] sm:$0xff]
    %v64 = vld [vmem:[%s2 + $0x88] sm:$0xff]
    %v65 = vld [vmem:[%s2 + $0x90] sm:$0xff]
    %v66 = vld [vmem:[%s2 + $0x98] sm:$0xff]
    %v67 = vld [vmem:[%s2 + $0xa0] sm:$0xff]
    %v68 = vld [vmem:[%s2 + $0xa8] sm:$0xff]
    %v69 = vld [vmem:[%s2 + $0xb0] sm:$0xff]
    %v70 = vld [vmem:[%s2 + $0xb8] sm:$0xff]
    %v71 = vld [vmem:[%s2 + $0xc0] sm:$0xff]
    %v72 = vld [vmem:[%s2 + $0xc8] sm:$0xff]
    %v73 = vld [vmem:[%s2 + $0xd0] sm:$0xff]
    %v74 = vld [vmem:[%s2 + $0xd8] sm:$0xff]
    %v75 = vld [vmem:[%s2 + $0xe0] sm:$0xff]
    %v76 = vld [vmem:[%s2 + $0xe8] sm:$0xff]
    %v77 = vld [vmem:[%s2 + $0xf0] sm:$0xff]
    %v78 = vld [vmem:[%s2 + $0xf8] sm:$0xff]
    %v79 = vld [vmem:[%s2 + $0x100] sm:$0xff]
    %v80 = vld [vmem:[%s2 + $0x108] sm:$0xff]
    %v81 = vld [vmem:[%s2 + $0x110] sm:$0xff]
    %v82 = vld [vmem:[%s2 + $0x118] sm:$0xff]
    %v83 = vld [vmem:[%s2 + $0x120] sm:$0xff]
    %v84 = vld [vmem:[%s2 + $0x128] sm:$0xff]
    %v85 = vld [vmem:[%s2 + $0x130] sm:$0xff]
    %v86 = vld [vmem:[%s2 + $0x138] sm:$0xff]
    %v87 = vld [vmem:[%s2 + $0x140] sm:$0xff]
    %v88 = vld [vmem:[%s2 + $0x148] sm:$0xff]
    %v89 = vld [vmem:[%s2 + $0x150] sm:$0xff]
    %v90 = vld [vmem:[%s2 + $0x158] sm:$0xff]
    %v91 = vld [vmem:[%s2 + $0x160] sm:$0xff]
    %v92 = vld [vmem:[%s2 + $0x168] sm:$0xff]
    %v93 = vld [vmem:[%s2 + $0x170] sm:$0xff]
    %v94 = vld [vmem:[%s2 + $0x178] sm:$0xff]
    %v95 = vld [vmem:[%s2 + $0x180] sm:$0xff]
    %v96 = vld [vmem:[%s2 + $0x188] sm:$0xff]
    %v97 = vld [vmem:[%s2 + $0x190] sm:$0xff]
    %v98 = vld [vmem:[%s2 + $0x198] sm:$0xff]
    %v99 = vld [vmem:[%s2 + $0x1a0] sm:$0xff]
    %v100 = vld [vmem:[%s2 + $0x1a8] sm:$0xff]
    %v101 = vld [vmem:[%s2 + $0x1b0] sm:$0xff]
    %v102 = vld [vmem:[%s2 + $0x1b8] sm:$0xff]
    %v103 = vld [vmem:[%s2 + $0x1c0] sm:$0xff]
    %v104 = vld [vmem:[%s2 + $0x1c8] sm:$0xff]
    %v105 = vld [vmem:[%s2 + $0x1d0] sm:$0xff]
    %v106 = vld [vmem:[%s2 + $0x1d8] sm:$0xff]
    %v107 = vld [vmem:[%s2 + $0x1e0] sm:$0xff]
    %v108 = vld [vmem:[%s2 + $0x1e8] sm:$0xff]
    %v109 = vld [vmem:[%s2 + $0x1f0] sm:$0xff]
    %v110 = vld [vmem:[%s2 + $0x1f8] sm:$0xff]
    %v111 = vld [vmem:[%s2 + $0x200] sm:$0xff]
    %v112 = vld [vmem:[%s2 + $0x208] sm:$0xff]
    %v113 = vld [vmem:[%s2 + $0x210] sm:$0xff]
    %v114 = vld [vmem:[%s2 + $0x218] sm:$0xff]
    %v115 = vld [vmem:[%s2 + $0x220] sm:$0xff]
    %v116 = vld [vmem:[%s2 + $0x228] sm:$0xff]
    %v117 = vld [vmem:[%s2 + $0x230] sm:$0xff]
    %v118 = vld [vmem:[%s2 + $0x238] sm:$0xff]
    %v119 = vld [vmem:[%s2 + $0x240] sm:$0xff]
    %v120 = vld [vmem:[%s2 + $0x248] sm:$0xff]
    %v121 = vld [vmem:[%s2 + $0x250] sm:$0xff]
    %v122 = vld [vmem:[%s2 + $0x258] sm:$0xff]
    %v123 = vld [vmem:[%s2 + $0x260] sm:$0xff]
    %v124 = vld [vmem:[%s2 + $0x268] sm:$0xff]
    %v125 = vld [vmem:[%s2 + $0x270] sm:$0xff]
    %v126 = vld [vmem:[%s2 + $0x278] sm:$0xff]
    %v127 = vld [vmem:[%s2 + $0x280] sm:$0xff]
    %v128 = vld [vmem:[%s2 + $0x288] sm:$0xff]
    %v129 = vld [vmem:[%s2 + $0x290] sm:$0xff]
    %v130 = vld [vmem:[%s2 + $0x298] sm:$0xff]
    %v131 = vld [vmem:[%s2 + $0x2a0] sm:$0xff]
    %v132 = vld [vmem:[%s2 + $0x2a8] sm:$0xff]
    %v133 = vld [vmem:[%s2 + $0x2b0] sm:$0xff]
    %v134 = vld [vmem:[%s2 + $0x2b8] sm:$0xff]
    %v135 = vld [vmem:[%s2 + $0x2c0] sm:$0xff]
    %v136 = vld [vmem:[%s2 + $0x2c8] sm:$0xff]
    %v137 = vld [vmem:[%s2 + $0x2d0] sm:$0xff]
    %v138 = vld [vmem:[%s2 + $0x2d8] sm:$0xff]
    %v139 = vld [vmem:[%s2 + $0x2e0] sm:$0xff]
    %v140 = vld [vmem:[%s2 + $0x2e8] sm:$0xff]
    %v141 = vld [vmem:[%s2 + $0x2f0] sm:$0xff]
    %v142 = vld [vmem:[%s2 + $0x2f8] sm:$0xff]
    %v143 = vld [vmem:[%s3] sm:$0x1]
    %v145 = vperm.slane %v143, 0
    %147 = vmatpush.msra.mxu0 %v62
    %148 = vmatpush.msra.mxu0 %v61
    %149 = vmatpush.msra.mxu0 %v60
    %150 = vmatpush.msra.mxu0 %v59
    %151 = vmatpush.msra.mxu0 %v58
    %152 = vmatpush.msra.mxu0 %v57
    %153 = vmatpush.msra.mxu0 %v56
    %154 = vmatpush.msra.mxu0 %v55
    %155 = vmatpush.msra.mxu0 %v54
    %156 = vmatpush.msra.mxu0 %v53
    %157 = vmatpush.msra.mxu0 %v52
    %158 = vmatpush.msra.mxu0 %v51
    %159 = vmatpush.msra.mxu0 %v50
    %160 = vmatpush.msra.mxu0 %v49
    %161 = vmatpush.msra.mxu0 %v48
    %162 = vmatpush.msra.mxu0 %v47
    %163 = vmatmul.f32.gmra.mxu0 %v41
    %v164 = vpop.f32.mrf.mxu0
    %v165 = vadd.f32 %v145, %v164
    %166 = vdwg.mxu0
    %167 = vmatpush.msra.mxu0 %v78
    %168 = vmatpush.msra.mxu0 %v77
    %169 = vmatpush.msra.mxu0 %v76
    %170 = vmatpush.msra.mxu0 %v75
    %171 = vmatpush.msra.mxu0 %v74
    %172 = vmatpush.msra.mxu0 %v73
    %173 = vmatpush.msra.mxu0 %v72
    %174 = vmatpush.msra.mxu0 %v71
    %175 = vmatpush.msra.mxu0 %v70
    %176 = vmatpush.msra.mxu0 %v69
    %177 = vmatpush.msra.mxu0 %v68
    %178 = vmatpush.msra.mxu0 %v67
    %179 = vmatpush.msra.mxu0 %v66
    %180 = vmatpush.msra.mxu0 %v65
    %181 = vmatpush.msra.mxu0 %v64
    %182 = vmatpush.msra.mxu0 %v63
    %183 = vmatmul.f32.gmra.mxu0 %v42
    %v184 = vpop.f32.mrf.mxu0
    %v185 = vadd.f32 %v165, %v184
    %186 = vdwg.mxu0
    %187 = vmatpush.msra.mxu0 %v94
    %188 = vmatpush.msra.mxu0 %v93
    %189 = vmatpush.msra.mxu0 %v92
    %190 = vmatpush.msra.mxu0 %v91
    %191 = vmatpush.msra.mxu0 %v90
    %192 = vmatpush.msra.mxu0 %v89
    %193 = vmatpush.msra.mxu0 %v88
    %194 = vmatpush.msra.mxu0 %v87
    %195 = vmatpush.msra.mxu0 %v86
    %196 = vmatpush.msra.mxu0 %v85
    %197 = vmatpush.msra.mxu0 %v84
    %198 = vmatpush.msra.mxu0 %v83
    %199 = vmatpush.msra.mxu0 %v82
    %200 = vmatpush.msra.mxu0 %v81
    %201 = vmatpush.msra.mxu0 %v80
    %202 = vmatpush.msra.mxu0 %v79
    %203 = vmatmul.f32.gmra.mxu0 %v43
    %v204 = vpop.f32.mrf.mxu0
    %v205 = vadd.f32 %v185, %v204
    %206 = vdwg.mxu0
    %207 = vmatpush.msra.mxu0 %v110
    %208 = vmatpush.msra.mxu0 %v109
    %209 = vmatpush.msra.mxu0 %v108
    %210 = vmatpush.msra.mxu0 %v107
    %211 = vmatpush.msra.mxu0 %v106
    %212 = vmatpush.msra.mxu0 %v105
    %213 = vmatpush.msra.mxu0 %v104
    %214 = vmatpush.msra.mxu0 %v103
    %215 = vmatpush.msra.mxu0 %v102
    %216 = vmatpush.msra.mxu0 %v101
    %217 = vmatpush.msra.mxu0 %v100
    %218 = vmatpush.msra.mxu0 %v99
    %219 = vmatpush.msra.mxu0 %v98
    %220 = vmatpush.msra.mxu0 %v97
    %221 = vmatpush.msra.mxu0 %v96
    %222 = vmatpush.msra.mxu0 %v95
    %223 = vmatmul.f32.gmra.mxu0 %v44
    %v224 = vpop.f32.mrf.mxu0
    %v225 = vadd.f32 %v205, %v224
    %226 = vdwg.mxu0
    %227 = vmatpush.msra.mxu0 %v126
    %228 = vmatpush.msra.mxu0 %v125
    %229 = vmatpush.msra.mxu0 %v124
    %230 = vmatpush.msra.mxu0 %v123
    %231 = vmatpush.msra.mxu0 %v122
    %232 = vmatpush.msra.mxu0 %v121
    %233 = vmatpush.msra.mxu0 %v120
    %234 = vmatpush.msra.mxu0 %v119
    %235 = vmatpush.msra.mxu0 %v118
    %236 = vmatpush.msra.mxu0 %v117
    %237 = vmatpush.msra.mxu0 %v116
    %238 = vmatpush.msra.mxu0 %v115
    %239 = vmatpush.msra.mxu0 %v114
    %240 = vmatpush.msra.mxu0 %v113
    %241 = vmatpush.msra.mxu0 %v112
    %242 = vmatpush.msra.mxu0 %v111
    %243 = vmatmul.f32.gmra.mxu0 %v45
    %v244 = vpop.f32.mrf.mxu0
    %v245 = vadd.f32 %v225, %v244
    %246 = vdwg.mxu0
    %247 = vmatpush.msra.mxu0 %v142
    %248 = vmatpush.msra.mxu0 %v141
    %249 = vmatpush.msra.mxu0 %v140
    %250 = vmatpush.msra.mxu0 %v139
    %251 = vmatpush.msra.mxu0 %v138
    %252 = vmatpush.msra.mxu0 %v137
    %253 = vmatpush.msra.mxu0 %v136
    %254 = vmatpush.msra.mxu0 %v135
    %255 = vmatpush.msra.mxu0 %v134
    %256 = vmatpush.msra.mxu0 %v133
    %257 = vmatpush.msra.mxu0 %v132
    %258 = vmatpush.msra.mxu0 %v131
    %259 = vmatpush.msra.mxu0 %v130
    %260 = vmatpush.msra.mxu0 %v129
    %261 = vmatpush.msra.mxu0 %v128
    %262 = vmatpush.msra.mxu0 %v127
    %263 = vmatmul.f32.gmra.mxu0 %v46
    %v264 = vpop.f32.mrf.mxu0
    %v265 = vadd.f32 %v245, %v264
    %266 = vdwg.mxu0
    %v267 = vld [vmem:[%s1] sm:$0xff]
    %v268 = vld [vmem:[%s1 + $0x8] sm:$0xff]
    %v269 = vld [vmem:[%s1 + $0x10] sm:$0xff]
    %v270 = vld [vmem:[%s1 + $0x18] sm:$0xff]
    %v271 = vld [vmem:[%s1 + $0x20] sm:$0xff]
    %v272 = vld [vmem:[%s1 + $0x28] sm:$0xff]
    %v273 = vld [vmem:[%s4] sm:$0xff]
    %v274 = vld [vmem:[%s4 + $0x8] sm:$0xff]
    %v275 = vld [vmem:[%s4 + $0x10] sm:$0xff]
    %v276 = vld [vmem:[%s4 + $0x18] sm:$0xff]
    %v277 = vld [vmem:[%s4 + $0x20] sm:$0xff]
    %v278 = vld [vmem:[%s4 + $0x28] sm:$0xff]
    %v279 = vld [vmem:[%s4 + $0x30] sm:$0xff]
    %v280 = vld [vmem:[%s4 + $0x38] sm:$0xff]
    %v281 = vld [vmem:[%s4 + $0x40] sm:$0xff]
    %v282 = vld [vmem:[%s4 + $0x48] sm:$0xff]
    %v283 = vld [vmem:[%s4 + $0x50] sm:$0xff]
    %v284 = vld [vmem:[%s4 + $0x58] sm:$0xff]
    %v285 = vld [vmem:[%s4 + $0x60] sm:$0xff]
    %v286 = vld [vmem:[%s4 + $0x68] sm:$0xff]
    %v287 = vld [vmem:[%s4 + $0x70] sm:$0xff]
    %v288 = vld [vmem:[%s4 + $0x78] sm:$0xff]
    %v289 = vld [vmem:[%s4 + $0x80] sm:$0xff]
    %v290 = vld [vmem:[%s4 + $0x88] sm:$0xff]
    %v291 = vld [vmem:[%s4 + $0x90] sm:$0xff]
    %v292 = vld [vmem:[%s4 + $0x98] sm:$0xff]
    %v293 = vld [vmem:[%s4 + $0xa0] sm:$0xff]
    %v294 = vld [vmem:[%s4 + $0xa8] sm:$0xff]
    %v295 = vld [vmem:[%s4 + $0xb0] sm:$0xff]
    %v296 = vld [vmem:[%s4 + $0xb8] sm:$0xff]
    %v297 = vld [vmem:[%s4 + $0xc0] sm:$0xff]
    %v298 = vld [vmem:[%s4 + $0xc8] sm:$0xff]
    %v299 = vld [vmem:[%s4 + $0xd0] sm:$0xff]
    %v300 = vld [vmem:[%s4 + $0xd8] sm:$0xff]
    %v301 = vld [vmem:[%s4 + $0xe0] sm:$0xff]
    %v302 = vld [vmem:[%s4 + $0xe8] sm:$0xff]
    %v303 = vld [vmem:[%s4 + $0xf0] sm:$0xff]
    %v304 = vld [vmem:[%s4 + $0xf8] sm:$0xff]
    %v305 = vld [vmem:[%s4 + $0x100] sm:$0xff]
    %v306 = vld [vmem:[%s4 + $0x108] sm:$0xff]
    %v307 = vld [vmem:[%s4 + $0x110] sm:$0xff]
    %v308 = vld [vmem:[%s4 + $0x118] sm:$0xff]
    %v309 = vld [vmem:[%s4 + $0x120] sm:$0xff]
    %v310 = vld [vmem:[%s4 + $0x128] sm:$0xff]
    %v311 = vld [vmem:[%s4 + $0x130] sm:$0xff]
    %v312 = vld [vmem:[%s4 + $0x138] sm:$0xff]
    %v313 = vld [vmem:[%s4 + $0x140] sm:$0xff]
    %v314 = vld [vmem:[%s4 + $0x148] sm:$0xff]
    %v315 = vld [vmem:[%s4 + $0x150] sm:$0xff]
    %v316 = vld [vmem:[%s4 + $0x158] sm:$0xff]
    %v317 = vld [vmem:[%s4 + $0x160] sm:$0xff]
    %v318 = vld [vmem:[%s4 + $0x168] sm:$0xff]
    %v319 = vld [vmem:[%s4 + $0x170] sm:$0xff]
    %v320 = vld [vmem:[%s4 + $0x178] sm:$0xff]
    %v321 = vld [vmem:[%s4 + $0x180] sm:$0xff]
    %v322 = vld [vmem:[%s4 + $0x188] sm:$0xff]
    %v323 = vld [vmem:[%s4 + $0x190] sm:$0xff]
    %v324 = vld [vmem:[%s4 + $0x198] sm:$0xff]
    %v325 = vld [vmem:[%s4 + $0x1a0] sm:$0xff]
    %v326 = vld [vmem:[%s4 + $0x1a8] sm:$0xff]
    %v327 = vld [vmem:[%s4 + $0x1b0] sm:$0xff]
    %v328 = vld [vmem:[%s4 + $0x1b8] sm:$0xff]
    %v329 = vld [vmem:[%s4 + $0x1c0] sm:$0xff]
    %v330 = vld [vmem:[%s4 + $0x1c8] sm:$0xff]
    %v331 = vld [vmem:[%s4 + $0x1d0] sm:$0xff]
    %v332 = vld [vmem:[%s4 + $0x1d8] sm:$0xff]
    %v333 = vld [vmem:[%s4 + $0x1e0] sm:$0xff]
    %v334 = vld [vmem:[%s4 + $0x1e8] sm:$0xff]
    %v335 = vld [vmem:[%s4 + $0x1f0] sm:$0xff]
    %v336 = vld [vmem:[%s4 + $0x1f8] sm:$0xff]
    %v337 = vld [vmem:[%s4 + $0x200] sm:$0xff]
    %v338 = vld [vmem:[%s4 + $0x208] sm:$0xff]
    %v339 = vld [vmem:[%s4 + $0x210] sm:$0xff]
    %v340 = vld [vmem:[%s4 + $0x218] sm:$0xff]
    %v341 = vld [vmem:[%s4 + $0x220] sm:$0xff]
    %v342 = vld [vmem:[%s4 + $0x228] sm:$0xff]
    %v343 = vld [vmem:[%s4 + $0x230] sm:$0xff]
    %v344 = vld [vmem:[%s4 + $0x238] sm:$0xff]
    %v345 = vld [vmem:[%s4 + $0x240] sm:$0xff]
    %v346 = vld [vmem:[%s4 + $0x248] sm:$0xff]
    %v347 = vld [vmem:[%s4 + $0x250] sm:$0xff]
    %v348 = vld [vmem:[%s4 + $0x258] sm:$0xff]
    %v349 = vld [vmem:[%s4 + $0x260] sm:$0xff]
    %v350 = vld [vmem:[%s4 + $0x268] sm:$0xff]
    %v351 = vld [vmem:[%s4 + $0x270] sm:$0xff]
    %v352 = vld [vmem:[%s4 + $0x278] sm:$0xff]
    %v353 = vld [vmem:[%s4 + $0x280] sm:$0xff]
    %v354 = vld [vmem:[%s4 + $0x288] sm:$0xff]
    %v355 = vld [vmem:[%s4 + $0x290] sm:$0xff]
    %v356 = vld [vmem:[%s4 + $0x298] sm:$0xff]
    %v357 = vld [vmem:[%s4 + $0x2a0] sm:$0xff]
    %v358 = vld [vmem:[%s4 + $0x2a8] sm:$0xff]
    %v359 = vld [vmem:[%s4 + $0x2b0] sm:$0xff]
    %v360 = vld [vmem:[%s4 + $0x2b8] sm:$0xff]
    %v361 = vld [vmem:[%s4 + $0x2c0] sm:$0xff]
    %v362 = vld [vmem:[%s4 + $0x2c8] sm:$0xff]
    %v363 = vld [vmem:[%s4 + $0x2d0] sm:$0xff]
    %v364 = vld [vmem:[%s4 + $0x2d8] sm:$0xff]
    %v365 = vld [vmem:[%s4 + $0x2e0] sm:$0xff]
    %v366 = vld [vmem:[%s4 + $0x2e8] sm:$0xff]
    %v367 = vld [vmem:[%s4 + $0x2f0] sm:$0xff]
    %v368 = vld [vmem:[%s4 + $0x2f8] sm:$0xff]
    %v369 = vld [vmem:[%s5] sm:$0x1]
    %v371 = vperm.slane %v369, 0
    %373 = vmatpush.msra.mxu0 %v288
    %374 = vmatpush.msra.mxu0 %v287
    %375 = vmatpush.msra.mxu0 %v286
    %376 = vmatpush.msra.mxu0 %v285
    %377 = vmatpush.msra.mxu0 %v284
    %378 = vmatpush.msra.mxu0 %v283
    %379 = vmatpush.msra.mxu0 %v282
    %380 = vmatpush.msra.mxu0 %v281
    %381 = vmatpush.msra.mxu0 %v280
    %382 = vmatpush.msra.mxu0 %v279
    %383 = vmatpush.msra.mxu0 %v278
    %384 = vmatpush.msra.mxu0 %v277
    %385 = vmatpush.msra.mxu0 %v276
    %386 = vmatpush.msra.mxu0 %v275
    %387 = vmatpush.msra.mxu0 %v274
    %388 = vmatpush.msra.mxu0 %v273
    %389 = vmatmul.f32.gmra.mxu0 %v267
    %v390 = vpop.f32.mrf.mxu0
    %v391 = vadd.f32 %v371, %v390
    %392 = vdwg.mxu0
    %393 = vmatpush.msra.mxu0 %v304
    %394 = vmatpush.msra.mxu0 %v303
    %395 = vmatpush.msra.mxu0 %v302
    %396 = vmatpush.msra.mxu0 %v301
    %397 = vmatpush.msra.mxu0 %v300
    %398 = vmatpush.msra.mxu0 %v299
    %399 = vmatpush.msra.mxu0 %v298
    %400 = vmatpush.msra.mxu0 %v297
    %401 = vmatpush.msra.mxu0 %v296
    %402 = vmatpush.msra.mxu0 %v295
    %403 = vmatpush.msra.mxu0 %v294
    %404 = vmatpush.msra.mxu0 %v293
    %405 = vmatpush.msra.mxu0 %v292
    %406 = vmatpush.msra.mxu0 %v291
    %407 = vmatpush.msra.mxu0 %v290
    %408 = vmatpush.msra.mxu0 %v289
    %409 = vmatmul.f32.gmra.mxu0 %v268
    %v410 = vpop.f32.mrf.mxu0
    %v411 = vadd.f32 %v391, %v410
    %412 = vdwg.mxu0
    %413 = vmatpush.msra.mxu0 %v320
    %414 = vmatpush.msra.mxu0 %v319
    %415 = vmatpush.msra.mxu0 %v318
    %416 = vmatpush.msra.mxu0 %v317
    %417 = vmatpush.msra.mxu0 %v316
    %418 = vmatpush.msra.mxu0 %v315
    %419 = vmatpush.msra.mxu0 %v314
    %420 = vmatpush.msra.mxu0 %v313
    %421 = vmatpush.msra.mxu0 %v312
    %422 = vmatpush.msra.mxu0 %v311
    %423 = vmatpush.msra.mxu0 %v310
    %424 = vmatpush.msra.mxu0 %v309
    %425 = vmatpush.msra.mxu0 %v308
    %426 = vmatpush.msra.mxu0 %v307
    %427 = vmatpush.msra.mxu0 %v306
    %428 = vmatpush.msra.mxu0 %v305
    %429 = vmatmul.f32.gmra.mxu0 %v269
    %v430 = vpop.f32.mrf.mxu0
    %v431 = vadd.f32 %v411, %v430
    %432 = vdwg.mxu0
    %433 = vmatpush.msra.mxu0 %v336
    %434 = vmatpush.msra.mxu0 %v335
    %435 = vmatpush.msra.mxu0 %v334
    %436 = vmatpush.msra.mxu0 %v333
    %437 = vmatpush.msra.mxu0 %v332
    %438 = vmatpush.msra.mxu0 %v331
    %439 = vmatpush.msra.mxu0 %v330
    %440 = vmatpush.msra.mxu0 %v329
    %441 = vmatpush.msra.mxu0 %v328
    %442 = vmatpush.msra.mxu0 %v327
    %443 = vmatpush.msra.mxu0 %v326
    %444 = vmatpush.msra.mxu0 %v325
    %445 = vmatpush.msra.mxu0 %v324
    %446 = vmatpush.msra.mxu0 %v323
    %447 = vmatpush.msra.mxu0 %v322
    %448 = vmatpush.msra.mxu0 %v321
    %449 = vmatmul.f32.gmra.mxu0 %v270
    %v450 = vpop.f32.mrf.mxu0
    %v451 = vadd.f32 %v431, %v450
    %452 = vdwg.mxu0
    %453 = vmatpush.msra.mxu0 %v352
    %454 = vmatpush.msra.mxu0 %v351
    %455 = vmatpush.msra.mxu0 %v350
    %456 = vmatpush.msra.mxu0 %v349
    %457 = vmatpush.msra.mxu0 %v348
    %458 = vmatpush.msra.mxu0 %v347
    %459 = vmatpush.msra.mxu0 %v346
    %460 = vmatpush.msra.mxu0 %v345
    %461 = vmatpush.msra.mxu0 %v344
    %462 = vmatpush.msra.mxu0 %v343
    %463 = vmatpush.msra.mxu0 %v342
    %464 = vmatpush.msra.mxu0 %v341
    %465 = vmatpush.msra.mxu0 %v340
    %466 = vmatpush.msra.mxu0 %v339
    %467 = vmatpush.msra.mxu0 %v338
    %468 = vmatpush.msra.mxu0 %v337
    %469 = vmatmul.f32.gmra.mxu0 %v271
    %v470 = vpop.f32.mrf.mxu0
    %v471 = vadd.f32 %v451, %v470
    %472 = vdwg.mxu0
    %473 = vmatpush.msra.mxu0 %v368
    %474 = vmatpush.msra.mxu0 %v367
    %475 = vmatpush.msra.mxu0 %v366
    %476 = vmatpush.msra.mxu0 %v365
    %477 = vmatpush.msra.mxu0 %v364
    %478 = vmatpush.msra.mxu0 %v363
    %479 = vmatpush.msra.mxu0 %v362
    %480 = vmatpush.msra.mxu0 %v361
    %481 = vmatpush.msra.mxu0 %v360
    %482 = vmatpush.msra.mxu0 %v359
    %483 = vmatpush.msra.mxu0 %v358
    %484 = vmatpush.msra.mxu0 %v357
    %485 = vmatpush.msra.mxu0 %v356
    %486 = vmatpush.msra.mxu0 %v355
    %487 = vmatpush.msra.mxu0 %v354
    %488 = vmatpush.msra.mxu0 %v353
    %489 = vmatmul.f32.gmra.mxu0 %v272
    %v490 = vpop.f32.mrf.mxu0
    %v491 = vadd.f32 %v471, %v490
    %492 = vdwg.mxu0
    %v493 = vld [vmem:[%s6] sm:$0xff]
    %v494 = vld [vmem:[%s6 + $0x8] sm:$0xff]
    %v495 = vld [vmem:[%s6 + $0x10] sm:$0xff]
    %v496 = vld [vmem:[%s6 + $0x18] sm:$0xff]
    %v497 = vld [vmem:[%s6 + $0x20] sm:$0xff]
    %v498 = vld [vmem:[%s6 + $0x28] sm:$0xff]
    %v499 = vld [vmem:[%s6 + $0x30] sm:$0xff]
    %v500 = vld [vmem:[%s6 + $0x38] sm:$0xff]
    %v501 = vld [vmem:[%s7] sm:$0xff]
    %v502 = vld [vmem:[%s7 + $0x8] sm:$0xff]
    %v503 = vld [vmem:[%s7 + $0x10] sm:$0xff]
    %v504 = vld [vmem:[%s7 + $0x18] sm:$0xff]
    %v505 = vld [vmem:[%s7 + $0x20] sm:$0xff]
    %v506 = vld [vmem:[%s7 + $0x28] sm:$0xff]
    %v507 = vld [vmem:[%s7 + $0x30] sm:$0xff]
    %v508 = vld [vmem:[%s7 + $0x38] sm:$0xff]
    %vm509 = vcmask 523264
    %v511 = vsel %vm509, %v491, 0
    %513 = vmatpush.msra.mxu0 0.0
    %514 = vmatpush.msra.mxu0 0.0
    %515 = vmatpush.msra.mxu0 0.0
    %516 = vmatpush.msra.mxu0 0.0
    %517 = vmatpush.msra.mxu0 0.0
    %518 = vmatpush.msra.mxu0 0.0
    %519 = vmatpush.msra.mxu0 0.0
    %520 = vmatpush.msra.mxu0 0.0
    %521 = vmatpush.msra.mxu0 %v508
    %522 = vmatpush.msra.mxu0 %v507
    %523 = vmatpush.msra.mxu0 %v506
    %524 = vmatpush.msra.mxu0 %v505
    %525 = vmatpush.msra.mxu0 %v504
    %526 = vmatpush.msra.mxu0 %v503
    %527 = vmatpush.msra.mxu0 %v502
    %528 = vmatpush.msra.mxu0 %v501
    %529 = vmatmul.f32.gmra.mxu0 %v511
    %v530 = vpop.f32.mrf.mxu0
    %v531 = vadd.f32 0.0, %v530
    %532 = vdwg.mxu0
    %v534 = vsel %vm509, %v265, 0
    %536 = vmatpush.msra.mxu0 0.0
    %537 = vmatpush.msra.mxu0 0.0
    %538 = vmatpush.msra.mxu0 0.0
    %539 = vmatpush.msra.mxu0 0.0
    %540 = vmatpush.msra.mxu0 0.0
    %541 = vmatpush.msra.mxu0 0.0
    %542 = vmatpush.msra.mxu0 0.0
    %543 = vmatpush.msra.mxu0 0.0
    %544 = vmatpush.msra.mxu0 %v500
    %545 = vmatpush.msra.mxu0 %v499
    %546 = vmatpush.msra.mxu0 %v498
    %547 = vmatpush.msra.mxu0 %v497
    %548 = vmatpush.msra.mxu0 %v496
    %549 = vmatpush.msra.mxu0 %v495
    %550 = vmatpush.msra.mxu0 %v494
    %551 = vmatpush.msra.mxu0 %v493
    %552 = vmatmul.f32.gmra.mxu0 %v534
    %v553 = vpop.f32.mrf.mxu0
    %v554 = vadd.f32 %v531, %v553
    %555 = vdwg.mxu0
    %v556 = vld [vmem:[%s8] sm:$0x1]
    %v558 = vperm.slane %v556, 0
    %v560 = vadd.f32 %v554, %v558
    %v561 = vmax.f32 %v560, 0.0
    %v562 = vld [vmem:[%s9] sm:$0x1]
    %v563 = vld [vmem:[#allocation2] sm:$0x1]
    %565 = vset.pattern.permute.xlu0 0
    %566 = vperm.xlu0 %565, %v563
    %v567 = vpop.permute.xlu0 %566
    %v569 = vperm.slane %v567, 0
    %vm570 = vcmask 261120
    %v572 = vsel %vm570, %v562, 0
    %v575 = vsel %vm570, %v561, 0
    %577 = vmatpush.xpose.msra.mxu0 0.0
    %578 = vmatpush.xpose.msra.mxu0 0.0
    %579 = vmatpush.xpose.msra.mxu0 0.0
    %580 = vmatpush.xpose.msra.mxu0 0.0
    %581 = vmatpush.xpose.msra.mxu0 0.0
    %582 = vmatpush.xpose.msra.mxu0 0.0
    %583 = vmatpush.xpose.msra.mxu0 0.0
    %584 = vmatpush.xpose.msra.mxu0 0.0
    %585 = vmatpush.xpose.msra.mxu0 0.0
    %586 = vmatpush.xpose.msra.mxu0 0.0
    %587 = vmatpush.xpose.msra.mxu0 0.0
    %588 = vmatpush.xpose.msra.mxu0 0.0
    %589 = vmatpush.xpose.msra.mxu0 0.0
    %590 = vmatpush.xpose.msra.mxu0 0.0
    %591 = vmatpush.xpose.msra.mxu0 0.0
    %592 = vmatpush.xpose.msra.mxu0 %v575
    %593 = vmatmul.f32.gmra.mxu0 %v572
    %v594 = vpop.f32.mrf.mxu0
    %v595 = vadd.f32 %v569, %v594
    %596 = vdwg.mxu0
    %vm597 = vcmask 57344
    %598 = vst.msk [vmem:[#allocation3] sm:$0x1] %vm597, %v595
    // Predicated region
    $region46: #{tpu_custom_call.1} parent=1 // pred_check
      _
    $region47: #{tpu_custom_call.1} parent=1 // pred_check_branch
      %600 = sbr.rel (0) target = $region49
    $region48: #{tpu_custom_call.1} parent=1 // pred_region
      %602 = vsyncadd [#allocation4], 0
      %s604 = sshll.u32 [#allocation3], 4
      %s605 = int_to_ptr.vmem [resolvable:$true] %s604
      %s606 = sshll.u32 %s11, 4
      %s607 = int_to_ptr.hbm [resolvable:$true] %s606
      %609 = dma.vmem_to_hbm [thread:$0]  %s605, 16, %s607, [#allocation4]
    $region49: #{tpu_custom_call.1} parent=1 // pred_fallthru
      _
    // Predicated region
    $region50: #{tpu_custom_call.1} parent=1 // pred_check
      _
    $region51: #{tpu_custom_call.1} parent=1 // pred_check_branch
      %611 = sbr.rel (0) target = $region53
    $region52: #{tpu_custom_call.1} parent=1 // pred_region
      %613 = dma.done [#allocation4], 16
    $region53: #{tpu_custom_call.1} parent=1 // pred_fallthru
      _
    %614 = vsyncpa [#allocation4], 1

</llo_original>
